<compile_context>
chip_gen: v5e
topology: v5e:2x2
jax: 0.10.0
libtpu: 0.0.40
codegen_flags: <defaults>
</compile_context>

<pallas_src>
import functools

import jax
import jax.numpy as jnp
from jax.experimental import pallas as pl
from jax.experimental.pallas import tpu as pltpu

EPS = 1e-5


def _instance_norm(y):
    """InstanceNorm over the lane (spatial) axis of a (C, H*W) tile.

    One-pass sum / sum-of-squares; biased variance, eps=1e-5, affine=False
    (PyTorch nn.InstanceNorm2d defaults).
    """
    n = y.shape[-1]
    inv_n = 1.0 / n
    mean = jnp.sum(y, axis=-1, keepdims=True) * inv_n
    var = jnp.sum(y * y, axis=-1, keepdims=True) * inv_n - mean * mean
    var = jnp.maximum(var, 0.0)
    return (y - mean) * jax.lax.rsqrt(var + EPS)


def residual_block_kernel(xf_ref, w1_ref, w2_ref, o_ref, cols_ref, ypad_ref, *, W):
    """Fused conv3x3 -> IN -> ReLU -> conv3x3 -> IN -> +residual, one batch elem.

    xf_ref:   (C, (H+2)*W + 2)  padded-flat input activation (zero row above and
              below the image, flattened over (H, W) onto lanes, plus one zero
              element at each end of the flat axis).
    w*_ref:   (C, 9*C)          im2col weights, K ordered (ky, kx, c_in).
    o_ref:    (C, H*W)          output (NCHW flattened -> lane-dense stores).
    cols_ref: (9*C, H*W)        VMEM scratch for the im2col matrix.
    ypad_ref: (C, (H+2)*W + 2)  VMEM scratch, padded-flat ReLU output for conv2.
    """
    C, HW = o_ref.shape
    Lp = ypad_ref.shape[1]            # (H+2)*W + 2

    # Left/right image-column masks (hoisted; reused by all taps of both convs).
    col = jax.lax.broadcasted_iota(jnp.int32, (1, HW), 1) % W
    left = col == 0
    right = col == W - 1

    def im2col(src_ref):
        # Tap (ky, kx) of the 3x3 neighborhood == contiguous lane slice of the
        # padded-flat activation starting at ky*W + kx, with the left/right
        # image columns zeroed for kx == 0 / kx == 2.
        for ky in range(3):
            for kx in range(3):
                k = ky * 3 + kx
                start = ky * W + kx
                t = src_ref[:, start:start + HW]
                if kx == 0:
                    t = jnp.where(left, 0.0, t)
                elif kx == 2:
                    t = jnp.where(right, 0.0, t)
                cols_ref[k * C:(k + 1) * C, :] = t
        return cols_ref[...]

    # --- stage 1: conv1 (single MXU matmul) -> InstanceNorm -> ReLU ----------
    y = jnp.dot(w1_ref[...], im2col(xf_ref), preferred_element_type=jnp.float32)
    y = jnp.maximum(_instance_norm(y), 0.0)

    # --- stage 2: conv2 -> InstanceNorm -> residual add ----------------------
    # Build the padded-flat version of y entirely in VMEM (no HBM round trip).
    ypad_ref[:, 0:W + 1] = jnp.zeros((C, W + 1), jnp.float32)
    ypad_ref[:, W + 1 + HW:Lp] = jnp.zeros((C, W + 1), jnp.float32)
    ypad_ref[:, W + 1:W + 1 + HW] = y

    z = jnp.dot(w2_ref[...], im2col(ypad_ref), preferred_element_type=jnp.float32)
    z = _instance_norm(z)

    # Residual: the unpadded input is the middle slice of the padded-flat input.
    o_ref[...] = xf_ref[:, W + 1:W + 1 + HW] + z


@jax.jit
def residual_block(x_nchw, w1, b1, w2, b2):
    """ResidualBlock forward. b1/b2 are accepted for interface parity but unused:
    a per-channel bias added before InstanceNorm (affine=False) is cancelled by
    the norm's mean subtraction, so it is dropped from the kernel."""
    del b1, b2
    N, C, H, W = x_nchw.shape
    HW = H * W
    L = (H + 2) * W + 2

    x = x_nchw.astype(jnp.float32)
    # Single ~1x-sized padded copy instead of 9x materialized taps:
    # pad H with one zero row top/bottom, flatten (H+2, W) onto the lane axis,
    # then pad the flat axis with one zero element at each end.
    xf = jnp.pad(x, ((0, 0), (0, 0), (1, 1), (0, 0))).reshape(N, C, (H + 2) * W)
    xf = jnp.pad(xf, ((0, 0), (0, 0), (1, 1)))           # (N, C, L)

    def prep_w(w):  # torch (Cout, Cin, 3, 3) -> (Cout, 9*Cin), K ordered (ky, kx, cin)
        return jnp.transpose(w, (0, 2, 3, 1)).reshape(C, 9 * C).astype(jnp.float32)

    kernel = functools.partial(residual_block_kernel, W=W)

    out_flat = pl.pallas_call(
        kernel,
        out_shape=jax.ShapeDtypeStruct((N, C, HW), jnp.float32),
        grid=(N,),
        in_specs=[
            pl.BlockSpec((None, C, L), lambda n: (n, 0, 0)),   # padded-flat input
            pl.BlockSpec((C, 9 * C), lambda n: (0, 0)),        # conv1 im2col weights
            pl.BlockSpec((C, 9 * C), lambda n: (0, 0)),        # conv2 im2col weights
        ],
        out_specs=pl.BlockSpec((None, C, HW), lambda n: (n, 0, 0)),
        scratch_shapes=[
            pltpu.VMEM((9 * C, HW), jnp.float32),              # im2col matrix
            pltpu.VMEM((C, L), jnp.float32),                   # padded ReLU output
        ],
        compiler_params=pltpu.CompilerParams(
            dimension_semantics=("parallel",),                 # batch -> both TCs on v7x
            vmem_limit_bytes=64 * 1024 * 1024,
        ),
    )(xf, prep_w(w1), prep_w(w2))

    return out_flat.reshape(N, C, H, W)


def ref_residual_block(x, w1, b1, w2, b2):
    """Pure-JAX reference mirroring the PyTorch module (biases included)."""
    def conv(x, w, b):
        y = jax.lax.conv_general_dilated(
            x, w, window_strides=(1, 1), padding=((1, 1), (1, 1)),
            dimension_numbers=("NCHW", "OIHW", "NCHW"))
        return y + b[None, :, None, None]

    def inorm(y):
        m = jnp.mean(y, axis=(2, 3), keepdims=True)
        v = jnp.mean((y - m) ** 2, axis=(2, 3), keepdims=True)
        return (y - m) / jnp.sqrt(v + EPS)

    h = jax.nn.relu(inorm(conv(x, w1, b1)))
    return x + inorm(conv(h, w2, b2))


if __name__ == "__main__":
    key = jax.random.PRNGKey(0)
    kx, k1, kb1, k2, kb2 = jax.random.split(key, 5)

    N, C, H, W = 2, 4, 16, 16
    x = jax.random.normal(kx, (N, C, H, W), jnp.float32)
    fan_in = C * 3 * 3
    w1 = jax.random.normal(k1, (C, C, 3, 3), jnp.float32) / jnp.sqrt(fan_in)
    b1 = 0.1 * jax.random.normal(kb1, (C,), jnp.float32)
    w2 = jax.random.normal(k2, (C, C, 3, 3), jnp.float32) / jnp.sqrt(fan_in)
    b2 = 0.1 * jax.random.normal(kb2, (C,), jnp.float32)

    out = residual_block(x, w1, b1, w2, b2)
    out = jax.block_until_ready(out)

    ref = ref_residual_block(x, w1, b1, w2, b2)
    assert out.shape == (N, C, H, W), out.shape
    max_err = float(jnp.max(jnp.abs(out - ref)))
    if not bool(jnp.allclose(out, ref, atol=2e-2, rtol=2e-2)):
        raise AssertionError(f"Pallas output mismatch, max abs err = {max_err}")

    print("KERNEL_OK")
</pallas_src>

<mosaic_0001>
module attributes {stable_mosaic.version = 11 : i64} {
  func.func @residual_block_kernel(%arg0: i32, %arg1: memref<1x4x290xf32, #tpu.memory_space<vmem>>, %arg2: memref<4x36xf32, #tpu.memory_space<vmem>>, %arg3: memref<4x36xf32, #tpu.memory_space<vmem>>, %arg4: memref<1x4x256xf32, #tpu.memory_space<vmem>>, %arg5: memref<36x256xf32, #tpu.memory_space<vmem>>, %arg6: memref<4x290xf32, #tpu.memory_space<vmem>>) attributes {dimension_semantics = [#tpu.dimension_semantics<parallel>], iteration_bounds = array<i64: 2>, scalar_prefetch = 0 : i64, scratch_operands = 2 : i64, tpu.core_type = #tpu.core_type<tc>, window_params = [{transform_indices = @transform_0, window_bounds = array<i64: 1, 4, 290>}, {pipeline_mode = #tpu.pipeline_mode<synchronous>, transform_indices = @transform_1, window_bounds = array<i64: 4, 36>}, {pipeline_mode = #tpu.pipeline_mode<synchronous>, transform_indices = @transform_2, window_bounds = array<i64: 4, 36>}, {transform_indices = @transform_3, window_bounds = array<i64: 1, 4, 256>}]} {
    %0 = tpu.iota {dimensions = array<i32: 1>} : vector<1x256xi32>
    %c16_i32 = arith.constant 16 : i32
    %c0_i32 = arith.constant 0 : i32
    %1 = arith.cmpi eq, %c16_i32, %c0_i32 : i32
    %c1_i32 = arith.constant 1 : i32
    %2 = arith.select %1, %c1_i32, %c16_i32 : i32
    %3 = vector.broadcast %2 : i32 to vector<1x256xi32>
    %4 = arith.remsi %0, %3 : vector<1x256xi32>
    %c0_i32_0 = arith.constant 0 : i32
    %5 = vector.broadcast %c0_i32_0 : i32 to vector<1x256xi32>
    %6 = arith.cmpi ne, %4, %5 : vector<1x256xi32>
    %c0_i32_1 = arith.constant 0 : i32
    %7 = vector.broadcast %c0_i32_1 : i32 to vector<1x256xi32>
    %8 = arith.cmpi slt, %4, %7 : vector<1x256xi32>
    %c0_i32_2 = arith.constant 0 : i32
    %9 = arith.cmpi slt, %2, %c0_i32_2 : i32
    %10 = vector.broadcast %9 : i1 to vector<1x256xi1>
    %11 = vector.broadcast %10 : vector<1x256xi1> to vector<1x256xi1>
    %12 = arith.xori %8, %11 : vector<1x256xi1>
    %13 = arith.andi %12, %6 : vector<1x256xi1>
    %14 = vector.broadcast %2 : i32 to vector<1x256xi32>
    %15 = arith.addi %4, %14 : vector<1x256xi32>
    %16 = arith.select %13, %15, %4 : vector<1x256xi1>, vector<1x256xi32>
    %c0_i32_3 = arith.constant 0 : i32
    %17 = vector.broadcast %c0_i32_3 : i32 to vector<1x256xi32>
    %18 = arith.cmpi eq, %16, %17 : vector<1x256xi32>
    %c15_i32 = arith.constant 15 : i32
    %19 = vector.broadcast %c15_i32 : i32 to vector<1x256xi32>
    %20 = arith.cmpi eq, %16, %19 : vector<1x256xi32>
    %c0 = arith.constant 0 : index
    %c0_4 = arith.constant 0 : index
    %21 = vector.load %arg2[%c0, %c0_4] : memref<4x36xf32, #tpu.memory_space<vmem>>, vector<4x36xf32>
    %c0_5 = arith.constant 0 : index
    %c0_6 = arith.constant 0 : index
    %c0_7 = arith.constant 0 : index
    %22 = vector.load %arg1[%c0_5, %c0_6, %c0_7] : memref<1x4x290xf32, #tpu.memory_space<vmem>>, vector<1x4x256xf32>
    %23 = vector.shape_cast %22 : vector<1x4x256xf32> to vector<4x256xf32>
    %cst = arith.constant 0.000000e+00 : f32
    %24 = vector.shape_cast %18 : vector<1x256xi1> to vector<1x256xi1>
    %25 = vector.broadcast %24 : vector<1x256xi1> to vector<4x256xi1>
    %26 = vector.broadcast %cst : f32 to vector<4x256xf32>
    %27 = arith.select %25, %26, %23 : vector<4x256xi1>, vector<4x256xf32>
    %c0_8 = arith.constant 0 : index
    %c0_9 = arith.constant 0 : index
    %28 = vector.load %arg5[%c0_8, %c0_9] : memref<36x256xf32, #tpu.memory_space<vmem>>, vector<4x256xf32>
    tpu.vector_store %arg5[%c0_8, %c0_9], %27 {strides = array<i32>} : memref<36x256xf32, #tpu.memory_space<vmem>>, vector<4x256xf32>,
    %c0_10 = arith.constant 0 : index
    %c0_11 = arith.constant 0 : index
    %c1 = arith.constant 1 : index
    %29 = vector.load %arg1[%c0_10, %c0_11, %c1] : memref<1x4x290xf32, #tpu.memory_space<vmem>>, vector<1x4x256xf32>
    %30 = vector.shape_cast %29 : vector<1x4x256xf32> to vector<4x256xf32>
    %c4 = arith.constant 4 : index
    %c0_12 = arith.constant 0 : index
    %31 = vector.load %arg5[%c4, %c0_12] : memref<36x256xf32, #tpu.memory_space<vmem>>, vector<4x256xf32>
    tpu.vector_store %arg5[%c4, %c0_12], %30 {strides = array<i32>} : memref<36x256xf32, #tpu.memory_space<vmem>>, vector<4x256xf32>,
    %c0_13 = arith.constant 0 : index
    %c0_14 = arith.constant 0 : index
    %c2 = arith.constant 2 : index
    %32 = vector.load %arg1[%c0_13, %c0_14, %c2] : memref<1x4x290xf32, #tpu.memory_space<vmem>>, vector<1x4x256xf32>
    %33 = vector.shape_cast %32 : vector<1x4x256xf32> to vector<4x256xf32>
    %cst_15 = arith.constant 0.000000e+00 : f32
    %34 = vector.shape_cast %20 : vector<1x256xi1> to vector<1x256xi1>
    %35 = vector.broadcast %34 : vector<1x256xi1> to vector<4x256xi1>
    %36 = vector.broadcast %cst_15 : f32 to vector<4x256xf32>
    %37 = arith.select %35, %36, %33 : vector<4x256xi1>, vector<4x256xf32>
    %c8 = arith.constant 8 : index
    %c0_16 = arith.constant 0 : index
    %38 = vector.load %arg5[%c8, %c0_16] : memref<36x256xf32, #tpu.memory_space<vmem>>, vector<4x256xf32>
    tpu.vector_store %arg5[%c8, %c0_16], %37 {strides = array<i32>} : memref<36x256xf32, #tpu.memory_space<vmem>>, vector<4x256xf32>,
    %c0_17 = arith.constant 0 : index
    %c0_18 = arith.constant 0 : index
    %c16 = arith.constant 16 : index
    %39 = vector.load %arg1[%c0_17, %c0_18, %c16] : memref<1x4x290xf32, #tpu.memory_space<vmem>>, vector<1x4x256xf32>
    %40 = vector.shape_cast %39 : vector<1x4x256xf32> to vector<4x256xf32>
    %cst_19 = arith.constant 0.000000e+00 : f32
    %41 = vector.shape_cast %18 : vector<1x256xi1> to vector<1x256xi1>
    %42 = vector.broadcast %41 : vector<1x256xi1> to vector<4x256xi1>
    %43 = vector.broadcast %cst_19 : f32 to vector<4x256xf32>
    %44 = arith.select %42, %43, %40 : vector<4x256xi1>, vector<4x256xf32>
    %c12 = arith.constant 12 : index
    %c0_20 = arith.constant 0 : index
    %45 = vector.load %arg5[%c12, %c0_20] : memref<36x256xf32, #tpu.memory_space<vmem>>, vector<4x256xf32>
    tpu.vector_store %arg5[%c12, %c0_20], %44 {strides = array<i32>} : memref<36x256xf32, #tpu.memory_space<vmem>>, vector<4x256xf32>,
    %c0_21 = arith.constant 0 : index
    %c0_22 = arith.constant 0 : index
    %c17 = arith.constant 17 : index
    %46 = vector.load %arg1[%c0_21, %c0_22, %c17] : memref<1x4x290xf32, #tpu.memory_space<vmem>>, vector<1x4x256xf32>
    %47 = vector.shape_cast %46 : vector<1x4x256xf32> to vector<4x256xf32>
    %c16_23 = arith.constant 16 : index
    %c0_24 = arith.constant 0 : index
    %48 = vector.load %arg5[%c16_23, %c0_24] : memref<36x256xf32, #tpu.memory_space<vmem>>, vector<4x256xf32>
    tpu.vector_store %arg5[%c16_23, %c0_24], %47 {strides = array<i32>} : memref<36x256xf32, #tpu.memory_space<vmem>>, vector<4x256xf32>,
    %c0_25 = arith.constant 0 : index
    %c0_26 = arith.constant 0 : index
    %c18 = arith.constant 18 : index
    %49 = vector.load %arg1[%c0_25, %c0_26, %c18] : memref<1x4x290xf32, #tpu.memory_space<vmem>>, vector<1x4x256xf32>
    %50 = vector.shape_cast %49 : vector<1x4x256xf32> to vector<4x256xf32>
    %cst_27 = arith.constant 0.000000e+00 : f32
    %51 = vector.shape_cast %20 : vector<1x256xi1> to vector<1x256xi1>
    %52 = vector.broadcast %51 : vector<1x256xi1> to vector<4x256xi1>
    %53 = vector.broadcast %cst_27 : f32 to vector<4x256xf32>
    %54 = arith.select %52, %53, %50 : vector<4x256xi1>, vector<4x256xf32>
    %c20 = arith.constant 20 : index
    %c0_28 = arith.constant 0 : index
    %55 = vector.load %arg5[%c20, %c0_28] : memref<36x256xf32, #tpu.memory_space<vmem>>, vector<4x256xf32>
    tpu.vector_store %arg5[%c20, %c0_28], %54 {strides = array<i32>} : memref<36x256xf32, #tpu.memory_space<vmem>>, vector<4x256xf32>,
    %c0_29 = arith.constant 0 : index
    %c0_30 = arith.constant 0 : index
    %c32 = arith.constant 32 : index
    %56 = vector.load %arg1[%c0_29, %c0_30, %c32] : memref<1x4x290xf32, #tpu.memory_space<vmem>>, vector<1x4x256xf32>
    %57 = vector.shape_cast %56 : vector<1x4x256xf32> to vector<4x256xf32>
    %cst_31 = arith.constant 0.000000e+00 : f32
    %58 = vector.shape_cast %18 : vector<1x256xi1> to vector<1x256xi1>
    %59 = vector.broadcast %58 : vector<1x256xi1> to vector<4x256xi1>
    %60 = vector.broadcast %cst_31 : f32 to vector<4x256xf32>
    %61 = arith.select %59, %60, %57 : vector<4x256xi1>, vector<4x256xf32>
    %c24 = arith.constant 24 : index
    %c0_32 = arith.constant 0 : index
    %62 = vector.load %arg5[%c24, %c0_32] : memref<36x256xf32, #tpu.memory_space<vmem>>, vector<4x256xf32>
    tpu.vector_store %arg5[%c24, %c0_32], %61 {strides = array<i32>} : memref<36x256xf32, #tpu.memory_space<vmem>>, vector<4x256xf32>,
    %c0_33 = arith.constant 0 : index
    %c0_34 = arith.constant 0 : index
    %c33 = arith.constant 33 : index
    %63 = vector.load %arg1[%c0_33, %c0_34, %c33] : memref<1x4x290xf32, #tpu.memory_space<vmem>>, vector<1x4x256xf32>
    %64 = vector.shape_cast %63 : vector<1x4x256xf32> to vector<4x256xf32>
    %c28 = arith.constant 28 : index
    %c0_35 = arith.constant 0 : index
    %65 = vector.load %arg5[%c28, %c0_35] : memref<36x256xf32, #tpu.memory_space<vmem>>, vector<4x256xf32>
    tpu.vector_store %arg5[%c28, %c0_35], %64 {strides = array<i32>} : memref<36x256xf32, #tpu.memory_space<vmem>>, vector<4x256xf32>,
    %c0_36 = arith.constant 0 : index
    %c0_37 = arith.constant 0 : index
    %c34 = arith.constant 34 : index
    %66 = vector.load %arg1[%c0_36, %c0_37, %c34] : memref<1x4x290xf32, #tpu.memory_space<vmem>>, vector<1x4x256xf32>
    %67 = vector.shape_cast %66 : vector<1x4x256xf32> to vector<4x256xf32>
    %cst_38 = arith.constant 0.000000e+00 : f32
    %68 = vector.shape_cast %20 : vector<1x256xi1> to vector<1x256xi1>
    %69 = vector.broadcast %68 : vector<1x256xi1> to vector<4x256xi1>
    %70 = vector.broadcast %cst_38 : f32 to vector<4x256xf32>
    %71 = arith.select %69, %70, %67 : vector<4x256xi1>, vector<4x256xf32>
    %c32_39 = arith.constant 32 : index
    %c0_40 = arith.constant 0 : index
    %72 = vector.load %arg5[%c32_39, %c0_40] : memref<36x256xf32, #tpu.memory_space<vmem>>, vector<4x256xf32>
    tpu.vector_store %arg5[%c32_39, %c0_40], %71 {strides = array<i32>} : memref<36x256xf32, #tpu.memory_space<vmem>>, vector<4x256xf32>,
    %c0_41 = arith.constant 0 : index
    %c0_42 = arith.constant 0 : index
    %73 = vector.load %arg5[%c0_41, %c0_42] : memref<36x256xf32, #tpu.memory_space<vmem>>, vector<36x256xf32>
    %cst_43 = arith.constant dense<0.000000e+00> : vector<4x256xf32>
    %74 = tpu.matmul %21, %73, %cst_43 {dimension_numbers = #tpu.dot_dimension_numbers<[1], [0], [0], [1], [0, 0, 1, 1], [], []>} : vector<4x36xf32>, vector<36x256xf32>, vector<4x256xf32> -> vector<4x256xf32>
    %cst_44 = arith.constant dense<0.000000e+00> : vector<4xf32>
    %75 = vector.multi_reduction <add>, %74, %cst_44 [1] : vector<4x256xf32> to vector<4xf32>
    %76 = vector.shape_cast %75 : vector<4xf32> to vector<4x1xf32>
    %cst_45 = arith.constant 3.906250e-03 : f32
    %77 = vector.broadcast %cst_45 : f32 to vector<4x1xf32>
    %78 = arith.mulf %76, %77 : vector<4x1xf32>
    %79 = arith.mulf %74, %74 : vector<4x256xf32>
    %cst_46 = arith.constant dense<0.000000e+00> : vector<4xf32>
    %80 = vector.multi_reduction <add>, %79, %cst_46 [1] : vector<4x256xf32> to vector<4xf32>
    %81 = vector.shape_cast %80 : vector<4xf32> to vector<4x1xf32>
    %cst_47 = arith.constant 3.906250e-03 : f32
    %82 = vector.broadcast %cst_47 : f32 to vector<4x1xf32>
    %83 = arith.mulf %81, %82 : vector<4x1xf32>
    %84 = arith.mulf %78, %78 : vector<4x1xf32>
    %85 = arith.subf %83, %84 : vector<4x1xf32>
    %cst_48 = arith.constant 0.000000e+00 : f32
    %86 = vector.broadcast %cst_48 : f32 to vector<4x1xf32>
    %87 = arith.maximumf %85, %86 : vector<4x1xf32>
    %88 = vector.broadcast %78 : vector<4x1xf32> to vector<4x256xf32>
    %89 = arith.subf %74, %88 : vector<4x256xf32>
    %cst_49 = arith.constant 9.99999974E-6 : f32
    %90 = vector.broadcast %cst_49 : f32 to vector<4x1xf32>
    %91 = arith.addf %87, %90 : vector<4x1xf32>
    %92 = math.rsqrt %91 : vector<4x1xf32>
    %93 = vector.broadcast %92 : vector<4x1xf32> to vector<4x256xf32>
    %94 = arith.mulf %89, %93 : vector<4x256xf32>
    %cst_50 = arith.constant 0.000000e+00 : f32
    %95 = vector.broadcast %cst_50 : f32 to vector<4x256xf32>
    %96 = arith.maximumf %94, %95 : vector<4x256xf32>
    %cst_51 = arith.constant 0.000000e+00 : f32
    %97 = vector.broadcast %cst_51 : f32 to vector<4x17xf32>
    %c0_52 = arith.constant 0 : index
    %c0_53 = arith.constant 0 : index
    %98 = vector.load %arg6[%c0_52, %c0_53] : memref<4x290xf32, #tpu.memory_space<vmem>>, vector<4x17xf32>
    tpu.vector_store %arg6[%c0_52, %c0_53], %97 {strides = array<i32>} : memref<4x290xf32, #tpu.memory_space<vmem>>, vector<4x17xf32>,
    %cst_54 = arith.constant 0.000000e+00 : f32
    %99 = vector.broadcast %cst_54 : f32 to vector<4x17xf32>
    %c0_55 = arith.constant 0 : index
    %c273 = arith.constant 273 : index
    %100 = vector.load %arg6[%c0_55, %c273] : memref<4x290xf32, #tpu.memory_space<vmem>>, vector<4x17xf32>
    tpu.vector_store %arg6[%c0_55, %c273], %99 {strides = array<i32>} : memref<4x290xf32, #tpu.memory_space<vmem>>, vector<4x17xf32>,
    %c0_56 = arith.constant 0 : index
    %c17_57 = arith.constant 17 : index
    %101 = vector.load %arg6[%c0_56, %c17_57] : memref<4x290xf32, #tpu.memory_space<vmem>>, vector<4x256xf32>
    tpu.vector_store %arg6[%c0_56, %c17_57], %96 {strides = array<i32>} : memref<4x290xf32, #tpu.memory_space<vmem>>, vector<4x256xf32>,
    %c0_58 = arith.constant 0 : index
    %c0_59 = arith.constant 0 : index
    %102 = vector.load %arg3[%c0_58, %c0_59] : memref<4x36xf32, #tpu.memory_space<vmem>>, vector<4x36xf32>
    %c0_60 = arith.constant 0 : index
    %c0_61 = arith.constant 0 : index
    %103 = vector.load %arg6[%c0_60, %c0_61] : memref<4x290xf32, #tpu.memory_space<vmem>>, vector<4x256xf32>
    %cst_62 = arith.constant 0.000000e+00 : f32
    %104 = vector.shape_cast %18 : vector<1x256xi1> to vector<1x256xi1>
    %105 = vector.broadcast %104 : vector<1x256xi1> to vector<4x256xi1>
    %106 = vector.broadcast %cst_62 : f32 to vector<4x256xf32>
    %107 = arith.select %105, %106, %103 : vector<4x256xi1>, vector<4x256xf32>
    %c0_63 = arith.constant 0 : index
    %c0_64 = arith.constant 0 : index
    %108 = vector.load %arg5[%c0_63, %c0_64] : memref<36x256xf32, #tpu.memory_space<vmem>>, vector<4x256xf32>
    tpu.vector_store %arg5[%c0_63, %c0_64], %107 {strides = array<i32>} : memref<36x256xf32, #tpu.memory_space<vmem>>, vector<4x256xf32>,
    %c0_65 = arith.constant 0 : index
    %c1_66 = arith.constant 1 : index
    %109 = vector.load %arg6[%c0_65, %c1_66] : memref<4x290xf32, #tpu.memory_space<vmem>>, vector<4x256xf32>
    %c4_67 = arith.constant 4 : index
    %c0_68 = arith.constant 0 : index
    %110 = vector.load %arg5[%c4_67, %c0_68] : memref<36x256xf32, #tpu.memory_space<vmem>>, vector<4x256xf32>
    tpu.vector_store %arg5[%c4_67, %c0_68], %109 {strides = array<i32>} : memref<36x256xf32, #tpu.memory_space<vmem>>, vector<4x256xf32>,
    %c0_69 = arith.constant 0 : index
    %c2_70 = arith.constant 2 : index
    %111 = vector.load %arg6[%c0_69, %c2_70] : memref<4x290xf32, #tpu.memory_space<vmem>>, vector<4x256xf32>
    %cst_71 = arith.constant 0.000000e+00 : f32
    %112 = vector.shape_cast %20 : vector<1x256xi1> to vector<1x256xi1>
    %113 = vector.broadcast %112 : vector<1x256xi1> to vector<4x256xi1>
    %114 = vector.broadcast %cst_71 : f32 to vector<4x256xf32>
    %115 = arith.select %113, %114, %111 : vector<4x256xi1>, vector<4x256xf32>
    %c8_72 = arith.constant 8 : index
    %c0_73 = arith.constant 0 : index
    %116 = vector.load %arg5[%c8_72, %c0_73] : memref<36x256xf32, #tpu.memory_space<vmem>>, vector<4x256xf32>
    tpu.vector_store %arg5[%c8_72, %c0_73], %115 {strides = array<i32>} : memref<36x256xf32, #tpu.memory_space<vmem>>, vector<4x256xf32>,
    %c0_74 = arith.constant 0 : index
    %c16_75 = arith.constant 16 : index
    %117 = vector.load %arg6[%c0_74, %c16_75] : memref<4x290xf32, #tpu.memory_space<vmem>>, vector<4x256xf32>
    %cst_76 = arith.constant 0.000000e+00 : f32
    %118 = vector.shape_cast %18 : vector<1x256xi1> to vector<1x256xi1>
    %119 = vector.broadcast %118 : vector<1x256xi1> to vector<4x256xi1>
    %120 = vector.broadcast %cst_76 : f32 to vector<4x256xf32>
    %121 = arith.select %119, %120, %117 : vector<4x256xi1>, vector<4x256xf32>
    %c12_77 = arith.constant 12 : index
    %c0_78 = arith.constant 0 : index
    %122 = vector.load %arg5[%c12_77, %c0_78] : memref<36x256xf32, #tpu.memory_space<vmem>>, vector<4x256xf32>
    tpu.vector_store %arg5[%c12_77, %c0_78], %121 {strides = array<i32>} : memref<36x256xf32, #tpu.memory_space<vmem>>, vector<4x256xf32>,
    %c0_79 = arith.constant 0 : index
    %c17_80 = arith.constant 17 : index
    %123 = vector.load %arg6[%c0_79, %c17_80] : memref<4x290xf32, #tpu.memory_space<vmem>>, vector<4x256xf32>
    %c16_81 = arith.constant 16 : index
    %c0_82 = arith.constant 0 : index
    %124 = vector.load %arg5[%c16_81, %c0_82] : memref<36x256xf32, #tpu.memory_space<vmem>>, vector<4x256xf32>
    tpu.vector_store %arg5[%c16_81, %c0_82], %123 {strides = array<i32>} : memref<36x256xf32, #tpu.memory_space<vmem>>, vector<4x256xf32>,
    %c0_83 = arith.constant 0 : index
    %c18_84 = arith.constant 18 : index
    %125 = vector.load %arg6[%c0_83, %c18_84] : memref<4x290xf32, #tpu.memory_space<vmem>>, vector<4x256xf32>
    %cst_85 = arith.constant 0.000000e+00 : f32
    %126 = vector.shape_cast %20 : vector<1x256xi1> to vector<1x256xi1>
    %127 = vector.broadcast %126 : vector<1x256xi1> to vector<4x256xi1>
    %128 = vector.broadcast %cst_85 : f32 to vector<4x256xf32>
    %129 = arith.select %127, %128, %125 : vector<4x256xi1>, vector<4x256xf32>
    %c20_86 = arith.constant 20 : index
    %c0_87 = arith.constant 0 : index
    %130 = vector.load %arg5[%c20_86, %c0_87] : memref<36x256xf32, #tpu.memory_space<vmem>>, vector<4x256xf32>
    tpu.vector_store %arg5[%c20_86, %c0_87], %129 {strides = array<i32>} : memref<36x256xf32, #tpu.memory_space<vmem>>, vector<4x256xf32>,
    %c0_88 = arith.constant 0 : index
    %c32_89 = arith.constant 32 : index
    %131 = vector.load %arg6[%c0_88, %c32_89] : memref<4x290xf32, #tpu.memory_space<vmem>>, vector<4x256xf32>
    %cst_90 = arith.constant 0.000000e+00 : f32
    %132 = vector.shape_cast %18 : vector<1x256xi1> to vector<1x256xi1>
    %133 = vector.broadcast %132 : vector<1x256xi1> to vector<4x256xi1>
    %134 = vector.broadcast %cst_90 : f32 to vector<4x256xf32>
    %135 = arith.select %133, %134, %131 : vector<4x256xi1>, vector<4x256xf32>
    %c24_91 = arith.constant 24 : index
    %c0_92 = arith.constant 0 : index
    %136 = vector.load %arg5[%c24_91, %c0_92] : memref<36x256xf32, #tpu.memory_space<vmem>>, vector<4x256xf32>
    tpu.vector_store %arg5[%c24_91, %c0_92], %135 {strides = array<i32>} : memref<36x256xf32, #tpu.memory_space<vmem>>, vector<4x256xf32>,
    %c0_93 = arith.constant 0 : index
    %c33_94 = arith.constant 33 : index
    %137 = vector.load %arg6[%c0_93, %c33_94] : memref<4x290xf32, #tpu.memory_space<vmem>>, vector<4x256xf32>
    %c28_95 = arith.constant 28 : index
    %c0_96 = arith.constant 0 : index
    %138 = vector.load %arg5[%c28_95, %c0_96] : memref<36x256xf32, #tpu.memory_space<vmem>>, vector<4x256xf32>
    tpu.vector_store %arg5[%c28_95, %c0_96], %137 {strides = array<i32>} : memref<36x256xf32, #tpu.memory_space<vmem>>, vector<4x256xf32>,
    %c0_97 = arith.constant 0 : index
    %c34_98 = arith.constant 34 : index
    %139 = vector.load %arg6[%c0_97, %c34_98] : memref<4x290xf32, #tpu.memory_space<vmem>>, vector<4x256xf32>
    %cst_99 = arith.constant 0.000000e+00 : f32
    %140 = vector.shape_cast %20 : vector<1x256xi1> to vector<1x256xi1>
    %141 = vector.broadcast %140 : vector<1x256xi1> to vector<4x256xi1>
    %142 = vector.broadcast %cst_99 : f32 to vector<4x256xf32>
    %143 = arith.select %141, %142, %139 : vector<4x256xi1>, vector<4x256xf32>
    %c32_100 = arith.constant 32 : index
    %c0_101 = arith.constant 0 : index
    %144 = vector.load %arg5[%c32_100, %c0_101] : memref<36x256xf32, #tpu.memory_space<vmem>>, vector<4x256xf32>
    tpu.vector_store %arg5[%c32_100, %c0_101], %143 {strides = array<i32>} : memref<36x256xf32, #tpu.memory_space<vmem>>, vector<4x256xf32>,
    %c0_102 = arith.constant 0 : index
    %c0_103 = arith.constant 0 : index
    %145 = vector.load %arg5[%c0_102, %c0_103] : memref<36x256xf32, #tpu.memory_space<vmem>>, vector<36x256xf32>
    %cst_104 = arith.constant dense<0.000000e+00> : vector<4x256xf32>
    %146 = tpu.matmul %102, %145, %cst_104 {dimension_numbers = #tpu.dot_dimension_numbers<[1], [0], [0], [1], [0, 0, 1, 1], [], []>} : vector<4x36xf32>, vector<36x256xf32>, vector<4x256xf32> -> vector<4x256xf32>
    %cst_105 = arith.constant dense<0.000000e+00> : vector<4xf32>
    %147 = vector.multi_reduction <add>, %146, %cst_105 [1] : vector<4x256xf32> to vector<4xf32>
    %148 = vector.shape_cast %147 : vector<4xf32> to vector<4x1xf32>
    %cst_106 = arith.constant 3.906250e-03 : f32
    %149 = vector.broadcast %cst_106 : f32 to vector<4x1xf32>
    %150 = arith.mulf %148, %149 : vector<4x1xf32>
    %151 = arith.mulf %146, %146 : vector<4x256xf32>
    %cst_107 = arith.constant dense<0.000000e+00> : vector<4xf32>
    %152 = vector.multi_reduction <add>, %151, %cst_107 [1] : vector<4x256xf32> to vector<4xf32>
    %153 = vector.shape_cast %152 : vector<4xf32> to vector<4x1xf32>
    %cst_108 = arith.constant 3.906250e-03 : f32
    %154 = vector.broadcast %cst_108 : f32 to vector<4x1xf32>
    %155 = arith.mulf %153, %154 : vector<4x1xf32>
    %156 = arith.mulf %150, %150 : vector<4x1xf32>
    %157 = arith.subf %155, %156 : vector<4x1xf32>
    %cst_109 = arith.constant 0.000000e+00 : f32
    %158 = vector.broadcast %cst_109 : f32 to vector<4x1xf32>
    %159 = arith.maximumf %157, %158 : vector<4x1xf32>
    %160 = vector.broadcast %150 : vector<4x1xf32> to vector<4x256xf32>
    %161 = arith.subf %146, %160 : vector<4x256xf32>
    %cst_110 = arith.constant 9.99999974E-6 : f32
    %162 = vector.broadcast %cst_110 : f32 to vector<4x1xf32>
    %163 = arith.addf %159, %162 : vector<4x1xf32>
    %164 = math.rsqrt %163 : vector<4x1xf32>
    %165 = vector.broadcast %164 : vector<4x1xf32> to vector<4x256xf32>
    %166 = arith.mulf %161, %165 : vector<4x256xf32>
    %c0_111 = arith.constant 0 : index
    %c0_112 = arith.constant 0 : index
    %c17_113 = arith.constant 17 : index
    %167 = vector.load %arg1[%c0_111, %c0_112, %c17_113] : memref<1x4x290xf32, #tpu.memory_space<vmem>>, vector<1x4x256xf32>
    %168 = vector.shape_cast %167 : vector<1x4x256xf32> to vector<4x256xf32>
    %169 = arith.addf %168, %166 : vector<4x256xf32>
    %c0_114 = arith.constant 0 : index
    %c0_115 = arith.constant 0 : index
    %c0_116 = arith.constant 0 : index
    %170 = vector.load %arg4[%c0_114, %c0_115, %c0_116] : memref<1x4x256xf32, #tpu.memory_space<vmem>>, vector<1x4x256xf32>
    %171 = vector.shape_cast %170 : vector<1x4x256xf32> to vector<4x256xf32>
    %172 = vector.shape_cast %169 : vector<4x256xf32> to vector<1x4x256xf32>
    tpu.vector_store %arg4[%c0_114, %c0_115, %c0_116], %172 {strides = array<i32>} : memref<1x4x256xf32, #tpu.memory_space<vmem>>, vector<1x4x256xf32>,
    return
  }
  func.func @transform_0(%arg0: i32) -> (i32, i32, i32) {
    %c0_i32 = arith.constant 0 : i32
    %c0_i32_0 = arith.constant 0 : i32
    %c0_i32_1 = arith.constant 0 : i32
    return %arg0, %c0_i32, %c0_i32_0 : i32, i32, i32
  }
  func.func @transform_1(%arg0: i32) -> (i32, i32) {
    %c0_i32 = arith.constant 0 : i32
    %c0_i32_0 = arith.constant 0 : i32
    %c0_i32_1 = arith.constant 0 : i32
    return %c0_i32, %c0_i32_0 : i32, i32
  }
  func.func @transform_2(%arg0: i32) -> (i32, i32) {
    %c0_i32 = arith.constant 0 : i32
    %c0_i32_0 = arith.constant 0 : i32
    %c0_i32_1 = arith.constant 0 : i32
    return %c0_i32, %c0_i32_0 : i32, i32
  }
  func.func @transform_3(%arg0: i32) -> (i32, i32, i32) {
    %c0_i32 = arith.constant 0 : i32
    %c0_i32_0 = arith.constant 0 : i32
    %c0_i32_1 = arith.constant 0 : i32
    return %arg0, %c0_i32, %c0_i32_0 : i32, i32, i32
  }
}

</mosaic_0001>

<llo_original>
// kernel: residual_block.1
$region0: #{residual_block.1}
  #allocation0 [shape = 'u32[]', space=smem, size = 0x4, offset = 0x4, fixed_abs, tag = 'smem constant byte address 0x4 - core index']
  #allocation1 [shape = 'u32[72,128]{1,0:T(1,128)}', space=vmem, size = 0x9000, scoped, tag = 'internal scratch']
  #allocation2 [shape = 'f32[36,256]{1,0:T(8,128)}', space=vmem, size = 0xa000, scoped, tag = 'scratch operand']
  #allocation3 [shape = 'f32[4,290]{1,0:T(4,128)}', space=vmem, size = 0x1800, scoped, tag = 'scratch operand']
  %s0 = inlined_call_operand.vmem [shape: f32[2,4,290], index: 0, kind: input, shape index: {}]
  %s1 = inlined_call_operand.vmem [shape: f32[4,36], index: 1, kind: input, shape index: {}]
  %s2 = inlined_call_operand.vmem [shape: f32[4,36], index: 2, kind: input, shape index: {}]
  %s3 = inlined_call_operand.vmem [shape: f32[2,4,256], index: 3, kind: output, shape index: {}]
  %s4 = sld [smem:[#allocation0]]
  $region45: #{residual_block.1} parent=0
    _
  %s6 = ssub.s32 1, %s4
  %s7 = scalar_select 0, %s6, %s4
  loop: start=0, step=1, limit=4
  $region2: #{residual_block.1} parent=0 // loop_pre_header
    _
  $region3: #{residual_block.1} parent=0 // loop_header
    %s9 = sphi 0, %s13
    %p10 = scmp.ge.s32.totalorder %s9, 4
    %s19 = sphi 0, %s21
    %s22 = sphi 0, %s19
    %s23 = sphi 0, %s22
    %s39 = sphi 0, %s23
    %s43 = sphi 0, %s43
    %s45 = sphi 0, %s43
    %s46 = sphi 0, %s45
    %s60 = sphi 0, %s46
    %s64 = sphi 0, %s64
    %s66 = sphi 0, %s64
    %s67 = sphi 0, %s66
    %s81 = sphi 0, %s67
    %s87 = sphi 0, %s89
    %s90 = sphi 0, %s87
    %s91 = sphi 0, %s90
    %s107 = sphi 0, %s91
  $region4: #{residual_block.1} parent=0 // loop_header_branch
    %12 = sbr.rel (%p10) target = $region8
  $region5: #{residual_block.1} parent=0 // loop_body
    %s14 = ssub.s32 %s9, 1
    %s15 = ssub.s32 %s9, 2
    %s16 = sadd.s32 %s9, 1
    %s17 = ssub.s32 %s9, %s16
    %p18 = scmp.eq.s32.totalorder %s17, 0
    %s20 = sadd.s32 %s19, 1
    %s21 = scalar_select %p18, %s19, %s20
    %p24 = pneg %p18
    %p25 = scmp.eq.s32.totalorder %s9, 1
    %p26 = por %p24, %p25
    %p27 = scmp.ne.s32.totalorder %s19, %s22
    %p28 = scmp.eq.s32.totalorder %s9, 0
    %p29 = por %p27, %p28
    %p30 = scmp.ne.s32.totalorder %s19, %s22
    %p31 = scmp.eq.s32.totalorder %s14, 1
    %p32 = por %p30, %p31
    %p33 = scmp.ne.s32.totalorder %s22, %s23
    %p34 = scmp.eq.s32.totalorder %s14, 0
    %p35 = por %p33, %p34
    %p36 = scmp.ne.s32.totalorder %s22, %s23
    %p37 = scmp.eq.s32.totalorder %s15, 1
    %p38 = por %p36, %p37
    %p40 = scmp.ne.s32.totalorder %s23, %s39
    %p41 = scmp.eq.s32.totalorder %s15, 0
    %p42 = por %p40, %p41
    %s44 = sadd.s32 %s43, 1
    %p47 = scmp.eq.s32.totalorder %s9, 1
    %p48 = scmp.ne.s32.totalorder %s43, %s45
    %p49 = scmp.eq.s32.totalorder %s9, 0
    %p50 = por %p48, %p49
    %p51 = scmp.ne.s32.totalorder %s43, %s45
    %p52 = scmp.eq.s32.totalorder %s14, 1
    %p53 = por %p51, %p52
    %p54 = scmp.ne.s32.totalorder %s45, %s46
    %p55 = scmp.eq.s32.totalorder %s14, 0
    %p56 = por %p54, %p55
    %p57 = scmp.ne.s32.totalorder %s45, %s46
    %p58 = scmp.eq.s32.totalorder %s15, 1
    %p59 = por %p57, %p58
    %p61 = scmp.ne.s32.totalorder %s46, %s60
    %p62 = scmp.eq.s32.totalorder %s15, 0
    %p63 = por %p61, %p62
    %s65 = sadd.s32 %s64, 1
    %p68 = scmp.eq.s32.totalorder %s9, 1
    %p69 = scmp.ne.s32.totalorder %s64, %s66
    %p70 = scmp.eq.s32.totalorder %s9, 0
    %p71 = por %p69, %p70
    %p72 = scmp.ne.s32.totalorder %s64, %s66
    %p73 = scmp.eq.s32.totalorder %s14, 1
    %p74 = por %p72, %p73
    %p75 = scmp.ne.s32.totalorder %s66, %s67
    %p76 = scmp.eq.s32.totalorder %s14, 0
    %p77 = por %p75, %p76
    %p78 = scmp.ne.s32.totalorder %s66, %s67
    %p79 = scmp.eq.s32.totalorder %s15, 1
    %p80 = por %p78, %p79
    %p82 = scmp.ne.s32.totalorder %s67, %s81
    %p83 = scmp.eq.s32.totalorder %s15, 0
    %p84 = por %p82, %p83
    %s85 = ssub.s32 %s9, %s16
    %p86 = scmp.eq.s32.totalorder %s85, 0
    %s88 = sadd.s32 %s87, 1
    %s89 = scalar_select %p86, %s87, %s88
    %p92 = pneg %p86
    %p93 = scmp.eq.s32.totalorder %s9, 1
    %p94 = por %p92, %p93
    %p95 = scmp.ne.s32.totalorder %s87, %s90
    %p96 = scmp.eq.s32.totalorder %s9, 0
    %p97 = por %p95, %p96
    %p98 = scmp.ne.s32.totalorder %s87, %s90
    %p99 = scmp.eq.s32.totalorder %s14, 1
    %p100 = por %p98, %p99
    %p101 = scmp.ne.s32.totalorder %s90, %s91
    %p102 = scmp.eq.s32.totalorder %s14, 0
    %p103 = por %p101, %p102
    %p104 = scmp.ne.s32.totalorder %s90, %s91
    %p105 = scmp.eq.s32.totalorder %s15, 1
    %p106 = por %p104, %p105
    %p108 = scmp.ne.s32.totalorder %s91, %s107
    %p109 = scmp.eq.s32.totalorder %s15, 0
    %p110 = por %p108, %p109
    %p111 = scmp.le.s32.totalorder 1, %s9
    %p112 = scmp.lt.s32.totalorder %s9, 3
    %p113 = pnand %p111, %p112
    %p114 = pneg %p113
    // Predicated region
    $region9: #{residual_block.1} parent=5 // pred_check
      _
    $region10: #{residual_block.1} parent=5 // pred_check_branch
      %116 = sbr.rel (%p113) target = $region12
    $region11: #{residual_block.1} parent=5 // pred_region
      %s117 = ssub.s32 %s9, 1
      // Predicated region
      $region13: #{residual_block.1} parent=11 // pred_check
        %p118 = pneg %p56
      $region14: #{residual_block.1} parent=11 // pred_check_branch
        %120 = sbr.rel (%p118) target = $region16
      $region15: #{residual_block.1} parent=11 // pred_region
        _
      $region16: #{residual_block.1} parent=11 // pred_fallthru
        _
      // Predicated region
      $region17: #{residual_block.1} parent=11 // pred_check
        %p121 = pneg %p77
      $region18: #{residual_block.1} parent=11 // pred_check_branch
        %123 = sbr.rel (%p121) target = $region20
      $region19: #{residual_block.1} parent=11 // pred_region
        _
      $region20: #{residual_block.1} parent=11 // pred_fallthru
        _
    $region12: #{residual_block.1} parent=5 // pred_fallthru
      _
    %p124 = scmp.lt.s32.totalorder %s9, 2
    // Predicated region
    $region21: #{residual_block.1} parent=5 // pred_check
      %p125 = pneg %p124
    $region22: #{residual_block.1} parent=5 // pred_check_branch
      %127 = sbr.rel (%p125) target = $region24
    $region23: #{residual_block.1} parent=5 // pred_region
      // Predicated region
      $region25: #{residual_block.1} parent=23 // pred_check
        %p128 = pneg %p29
      $region26: #{residual_block.1} parent=23 // pred_check_branch
        %130 = sbr.rel (%p128) target = $region28
      $region27: #{residual_block.1} parent=23 // pred_region
        %p131 = scmp.lt.s32.totalorder %s9, 1
        %s132 = scalar_select %p131, %s9, 1
        %s133 = smul.addr %s132, 3
        %s134 = smul.addr %s133, 4
        %s135 = scalar_lea.vmem %s0, %s134
      $region28: #{residual_block.1} parent=23 // pred_fallthru
        _
    $region24: #{residual_block.1} parent=5 // pred_fallthru
      _
    %p136 = scmp.le.s32.totalorder 1, %s9
    %p137 = scmp.lt.s32.totalorder %s9, 3
    %p138 = pnand %p136, %p137
    %p139 = pneg %p138
    // Predicated region
    $region29: #{residual_block.1} parent=5 // pred_check
      _
    $region30: #{residual_block.1} parent=5 // pred_check_branch
      %141 = sbr.rel (%p138) target = $region32
    $region31: #{residual_block.1} parent=5 // pred_region
      %s142 = ssub.s32 %s9, 1
      %p143 = scmp.lt.s32.totalorder %s14, 1
      %s144 = scalar_select %p143, %s14, 1
      %s145 = smul.addr %s144, 3
      %s146 = smul.addr %s145, 4
      %s147 = scalar_lea.vmem %s0, %s146
      %p148 = pneg %p35
      %p149 = pneg %p32
      %p150 = pneg %p56
      %p151 = pneg %p53
      %p152 = pneg %p77
      %p153 = pneg %p74
      %p154 = pneg %p103
      %p155 = pneg %p100
      %p156 = scmp.lt.s32.totalorder %s14, 1
      %s157 = scalar_select %p156, %s14, 1
      %s158 = smul.addr %s157, 2
      %s159 = smul.addr %s158, 4
      %s160 = scalar_lea.vmem %s3, %s159
      %p161 = scmp.lt.s32.totalorder %s14, 1
      %s162 = scalar_select %p161, %s14, 1
      %s163 = smul.addr %s162, 3
      %s164 = smul.addr %s163, 4
      %s165 = scalar_lea.vmem %s0, %s164
      %p166 = scmp.lt.s32.totalorder %s14, 1
      %s167 = scalar_select %p166, %s14, 1
      %s168 = smul.addr %s167, 2
      %s169 = smul.addr %s168, 4
      %s170 = scalar_lea.vmem %s3, %s169
      %v171 = vlaneseq
      %v172 = vand.u32 %v171, 127
      %v173 = vadd.s32 %v172, 128
      %vm174 = vcmp.lt.s32.totalorder %v172, 0
      %v175 = vsub.s32 0, %v172
      %v176 = vsel %vm174, %v175, %v172
      %v177 = vshrl.u32 %v176, 4
      %v178 = vand.u32 %v176, 15
      %v179 = vsub.s32 0, %v178
      %v180 = vsel %vm174, %v179, %v178
      %vm181 = vcmp.lt.s32.totalorder %v173, 0
      %v182 = vsub.s32 0, %v173
      %v183 = vsel %vm181, %v182, %v173
      %v184 = vshrl.u32 %v183, 4
      %v185 = vand.u32 %v183, 15
      %v186 = vsub.s32 0, %v185
      %v187 = vsel %vm181, %v186, %v185
      %vm188 = vcmp.ne.s32.totalorder %v180, 0
      %vm189 = vcmp.ne.s32.totalorder %v187, 0
      %vm190 = vcmp.lt.s32.totalorder %v180, 0
      %vm191 = vcmp.lt.s32.totalorder %v187, 0
      %vm192 = vmand %vm190, %vm188
      %vm193 = vmand %vm191, %vm189
      %v194 = vadd.s32 %v180, 16
      %v195 = vadd.s32 %v187, 16
      %v196 = vsel %vm192, %v194, %v180
      %v197 = vsel %vm193, %v195, %v187
      %vm198 = vcmp.eq.s32.totalorder %v196, 0
      %vm199 = vcmp.eq.s32.totalorder %v197, 0
      %vm200 = vcmp.eq.s32.totalorder %v196, 15
      %vm201 = vcmp.eq.s32.totalorder %v197, 15
      %v202 = vld [vmem:[%s1] sm:$0xf]
      %v203 = vld [vmem:[%s165] sm:$0xff]
      %v204 = vsel %vm198, 1, 0
      %v205 = vsel %vm199, 1, 0
      %vm206 = vcmp.eq.s32.totalorder %v204, 1
      %vm207 = vcmp.eq.s32.totalorder %v205, 1
      %209 = vst [vmem:[#allocation1] ss:$2 sm:$0xff] %v203
      %v210 = vld.sshfl [vmem:[#allocation1] sm:$0xff pattern:$0x75316420]
      %v211 = vld.sshfl [vmem:[#allocation1 + $0x8] sm:$0xff pattern:$0x75316420]
      %v214 = vsel %vm206, 0.0, %v210
      %v215 = vsel %vm207, 0.0, %v211
      %216 = vst [vmem:[#allocation2] sm:$0xf] %v214
      %217 = vst [vmem:[#allocation2 + $0x8] sm:$0xf] %v215
      %v218 = vld [vmem:[%s165] sm:$0xff]
      %v219 = vld [vmem:[%s165 + $0x8] sm:$0xf]
      %s222 = scalar_lea.vmem [#allocation1], 1
      %223 = vst [vmem:[%s222] ss:$2 sm:$0xff] %v218
      %s224 = scalar_lea.vmem [#allocation1], 17
      %225 = vst [vmem:[%s224] ss:$2 sm:$0xff] %v219
      %v226 = vld.sshfl [vmem:[#allocation1] sm:$0xff pattern:$0x75316420]
      %v227 = vld.sshfl [vmem:[#allocation1 + $0x8] sm:$0xff pattern:$0x75316420]
      %v228 = vld.sshfl [vmem:[#allocation1 + $0x10] sm:$0xff pattern:$0x75316420]
      %229 = vrot.lane.b32.xlu0 %v226, 127
      %v230 = vpop.permute.xlu0 %229
      %231 = vrot.lane.b32.xlu0 %v227, 127
      %v232 = vpop.permute.xlu0 %231
      %233 = vrot.lane.b32.xlu0 %v228, 127
      %v234 = vpop.permute.xlu0 %233
      %vm235 = vcmask 1039360
      %v236 = vsel %vm235, %v230, %v232
      %v237 = vsel %vm235, %v232, %v234
      %240 = vst [vmem:[#allocation2] sm:$0xf0] %v236
      %241 = vst [vmem:[#allocation2 + $0x8] sm:$0xf0] %v237
      %v242 = vld [vmem:[%s165] sm:$0xff]
      %v243 = vld [vmem:[%s165 + $0x8] sm:$0xf]
      %v244 = vsel %vm200, 1, 0
      %v245 = vsel %vm201, 1, 0
      %vm246 = vcmp.eq.s32.totalorder %v244, 1
      %vm247 = vcmp.eq.s32.totalorder %v245, 1
      %250 = vst [vmem:[#allocation1] ss:$2 sm:$0xff] %v242
      %s251 = scalar_lea.vmem [#allocation1], 16
      %252 = vst [vmem:[%s251] ss:$2 sm:$0xff] %v243
      %v253 = vld.sshfl [vmem:[#allocation1] sm:$0xff pattern:$0x75316420]
      %v254 = vld.sshfl [vmem:[#allocation1 + $0x8] sm:$0xff pattern:$0x75316420]
      %v255 = vld.sshfl [vmem:[#allocation1 + $0x10] sm:$0xff pattern:$0x75316420]
      %256 = vrot.lane.b32.xlu0 %v253, 126
      %v257 = vpop.permute.xlu0 %256
      %258 = vrot.lane.b32.xlu0 %v254, 126
      %v259 = vpop.permute.xlu0 %258
      %260 = vrot.lane.b32.xlu0 %v255, 126
      %v261 = vpop.permute.xlu0 %260
      %vm262 = vcmask 1031168
      %v263 = vsel %vm262, %v257, %v259
      %v264 = vsel %vm262, %v259, %v261
      %v267 = vsel %vm246, 0.0, %v263
      %v268 = vsel %vm247, 0.0, %v264
      %269 = vst [vmem:[#allocation2 + $0x10] sm:$0xf] %v267
      %270 = vst [vmem:[#allocation2 + $0x18] sm:$0xf] %v268
      %v271 = vld [vmem:[%s165] sm:$0xff]
      %v272 = vld [vmem:[%s165 + $0x8] sm:$0xf]
      %275 = vst [vmem:[#allocation1] ss:$2 sm:$0xff] %v271
      %s276 = scalar_lea.vmem [#allocation1], 16
      %277 = vst [vmem:[%s276] ss:$2 sm:$0xff] %v272
      %v278 = vld.sshfl [vmem:[#allocation1] sm:$0xff pattern:$0x75316420]
      %v279 = vld.sshfl [vmem:[#allocation1 + $0x8] sm:$0xff pattern:$0x75316420]
      %v280 = vld.sshfl [vmem:[#allocation1 + $0x10] sm:$0xff pattern:$0x75316420]
      %281 = vrot.lane.b32.xlu0 %v278, 112
      %v282 = vpop.permute.xlu0 %281
      %283 = vrot.lane.b32.xlu0 %v279, 112
      %v284 = vpop.permute.xlu0 %283
      %285 = vrot.lane.b32.xlu0 %v280, 112
      %v286 = vpop.permute.xlu0 %285
      %vm287 = vcmask 916480
      %v288 = vsel %vm287, %v282, %v284
      %v289 = vsel %vm287, %v284, %v286
      %v292 = vsel %vm206, 0.0, %v288
      %v293 = vsel %vm207, 0.0, %v289
      %v296 = vrot.slane %v292, 4
      %v297 = vrot.slane %v293, 4
      %300 = vst [vmem:[#allocation2 + $0x10] sm:$0xf0] %v296
      %301 = vst [vmem:[#allocation2 + $0x18] sm:$0xf0] %v297
      %v302 = vld [vmem:[%s165] sm:$0xff]
      %v303 = vld [vmem:[%s165 + $0x8] sm:$0xf]
      %306 = vst [vmem:[#allocation1] ss:$2 sm:$0xff] %v302
      %s307 = scalar_lea.vmem [#allocation1], 16
      %308 = vst [vmem:[%s307] ss:$2 sm:$0xff] %v303
      %v309 = vld.sshfl [vmem:[#allocation1] sm:$0xff pattern:$0x75316420]
      %v310 = vld.sshfl [vmem:[#allocation1 + $0x8] sm:$0xff pattern:$0x75316420]
      %v311 = vld.sshfl [vmem:[#allocation1 + $0x10] sm:$0xff pattern:$0x75316420]
      %312 = vrot.lane.b32.xlu0 %v309, 111
      %v313 = vpop.permute.xlu0 %312
      %314 = vrot.lane.b32.xlu0 %v310, 111
      %v315 = vpop.permute.xlu0 %314
      %316 = vrot.lane.b32.xlu0 %v311, 111
      %v317 = vpop.permute.xlu0 %316
      %vm318 = vcmask 908288
      %v319 = vsel %vm318, %v313, %v315
      %v320 = vsel %vm318, %v315, %v317
      %323 = vst [vmem:[#allocation2 + $0x20] sm:$0xf] %v319
      %324 = vst [vmem:[#allocation2 + $0x28] sm:$0xf] %v320
      %v325 = vld [vmem:[%s165] sm:$0xff]
      %v326 = vld [vmem:[%s165 + $0x8] sm:$0xf]
      %329 = vst [vmem:[#allocation1] ss:$2 sm:$0xff] %v325
      %s330 = scalar_lea.vmem [#allocation1], 16
      %331 = vst [vmem:[%s330] ss:$2 sm:$0xff] %v326
      %v332 = vld.sshfl [vmem:[#allocation1] sm:$0xff pattern:$0x75316420]
      %v333 = vld.sshfl [vmem:[#allocation1 + $0x8] sm:$0xff pattern:$0x75316420]
      %v334 = vld.sshfl [vmem:[#allocation1 + $0x10] sm:$0xff pattern:$0x75316420]
      %335 = vrot.lane.b32.xlu0 %v332, 110
      %v336 = vpop.permute.xlu0 %335
      %337 = vrot.lane.b32.xlu0 %v333, 110
      %v338 = vpop.permute.xlu0 %337
      %339 = vrot.lane.b32.xlu0 %v334, 110
      %v340 = vpop.permute.xlu0 %339
      %vm341 = vcmask 900096
      %v342 = vsel %vm341, %v336, %v338
      %v343 = vsel %vm341, %v338, %v340
      %v346 = vsel %vm246, 0.0, %v342
      %v347 = vsel %vm247, 0.0, %v343
      %v350 = vrot.slane %v346, 4
      %v351 = vrot.slane %v347, 4
      %354 = vst [vmem:[#allocation2 + $0x20] sm:$0xf0] %v350
      %355 = vst [vmem:[#allocation2 + $0x28] sm:$0xf0] %v351
      %v356 = vld [vmem:[%s165] sm:$0xff]
      %v357 = vld [vmem:[%s165 + $0x8] sm:$0xf]
      %360 = vst [vmem:[#allocation1] ss:$2 sm:$0xff] %v356
      %s361 = scalar_lea.vmem [#allocation1], 16
      %362 = vst [vmem:[%s361] ss:$2 sm:$0xff] %v357
      %v363 = vld.sshfl [vmem:[#allocation1] sm:$0xff pattern:$0x75316420]
      %v364 = vld.sshfl [vmem:[#allocation1 + $0x8] sm:$0xff pattern:$0x75316420]
      %v365 = vld.sshfl [vmem:[#allocation1 + $0x10] sm:$0xff pattern:$0x75316420]
      %366 = vrot.lane.b32.xlu0 %v363, 96
      %v367 = vpop.permute.xlu0 %366
      %368 = vrot.lane.b32.xlu0 %v364, 96
      %v369 = vpop.permute.xlu0 %368
      %370 = vrot.lane.b32.xlu0 %v365, 96
      %v371 = vpop.permute.xlu0 %370
      %vm372 = vcmask 785408
      %v373 = vsel %vm372, %v367, %v369
      %v374 = vsel %vm372, %v369, %v371
      %v377 = vsel %vm206, 0.0, %v373
      %v378 = vsel %vm207, 0.0, %v374
      %379 = vst [vmem:[#allocation2 + $0x30] sm:$0xf] %v377
      %380 = vst [vmem:[#allocation2 + $0x38] sm:$0xf] %v378
      %v381 = vld [vmem:[%s165] sm:$0xff]
      %v382 = vld [vmem:[%s165 + $0x8] sm:$0xf]
      %s385 = scalar_lea.vmem [#allocation1], 1
      %386 = vst [vmem:[%s385] ss:$2 sm:$0xff] %v381
      %s387 = scalar_lea.vmem [#allocation1], 17
      %388 = vst [vmem:[%s387] ss:$2 sm:$0xff] %v382
      %v389 = vld.sshfl [vmem:[#allocation1] sm:$0xff pattern:$0x75316420]
      %v390 = vld.sshfl [vmem:[#allocation1 + $0x8] sm:$0xff pattern:$0x75316420]
      %v391 = vld.sshfl [vmem:[#allocation1 + $0x10] sm:$0xff pattern:$0x75316420]
      %392 = vrot.lane.b32.xlu0 %v389, 95
      %v393 = vpop.permute.xlu0 %392
      %394 = vrot.lane.b32.xlu0 %v390, 95
      %v395 = vpop.permute.xlu0 %394
      %396 = vrot.lane.b32.xlu0 %v391, 95
      %v397 = vpop.permute.xlu0 %396
      %vm398 = vcmask 777216
      %v399 = vsel %vm398, %v393, %v395
      %v400 = vsel %vm398, %v395, %v397
      %403 = vst [vmem:[#allocation2 + $0x30] sm:$0xf0] %v399
      %404 = vst [vmem:[#allocation2 + $0x38] sm:$0xf0] %v400
      %v405 = vld [vmem:[%s165] sm:$0xff]
      %v406 = vld [vmem:[%s165 + $0x8] sm:$0xf]
      %409 = vst [vmem:[#allocation1] ss:$2 sm:$0xff] %v405
      %s410 = scalar_lea.vmem [#allocation1], 16
      %411 = vst [vmem:[%s410] ss:$2 sm:$0xff] %v406
      %v412 = vld.sshfl [vmem:[#allocation1] sm:$0xff pattern:$0x75316420]
      %v413 = vld.sshfl [vmem:[#allocation1 + $0x8] sm:$0xff pattern:$0x75316420]
      %v414 = vld.sshfl [vmem:[#allocation1 + $0x10] sm:$0xff pattern:$0x75316420]
      %415 = vrot.lane.b32.xlu0 %v412, 94
      %v416 = vpop.permute.xlu0 %415
      %417 = vrot.lane.b32.xlu0 %v413, 94
      %v418 = vpop.permute.xlu0 %417
      %419 = vrot.lane.b32.xlu0 %v414, 94
      %v420 = vpop.permute.xlu0 %419
      %vm421 = vcmask 769024
      %v422 = vsel %vm421, %v416, %v418
      %v423 = vsel %vm421, %v418, %v420
      %v426 = vsel %vm246, 0.0, %v422
      %v427 = vsel %vm247, 0.0, %v423
      %428 = vst [vmem:[#allocation2 + $0x40] sm:$0xf] %v426
      %429 = vst [vmem:[#allocation2 + $0x48] sm:$0xf] %v427
      %v430 = vld [vmem:[#allocation2] sm:$0xff]
      %v431 = vld [vmem:[#allocation2 + $0x8] sm:$0xff]
      %v432 = vld [vmem:[#allocation2 + $0x10] sm:$0xff]
      %v433 = vld [vmem:[#allocation2 + $0x18] sm:$0xff]
      %v434 = vld [vmem:[#allocation2 + $0x20] sm:$0xff]
      %v435 = vld [vmem:[#allocation2 + $0x28] sm:$0xff]
      %v436 = vld [vmem:[#allocation2 + $0x30] sm:$0xff]
      %v437 = vld [vmem:[#allocation2 + $0x38] sm:$0xff]
      %v438 = vld [vmem:[#allocation2 + $0x40] sm:$0xf]
      %v439 = vld [vmem:[#allocation2 + $0x48] sm:$0xf]
      %vm440 = vcmask 293888
      %v442 = vsel %vm440, %v202, 0
      %vm444 = vcmask 1043456
      %v446 = vsel %vm444, %v438, 0
      %v449 = vsel %vm444, %v439, 0
      %451 = vmatpush.msra.mxu0 0.0
      %452 = vmatpush.msra.mxu0 0.0
      %453 = vmatpush.msra.mxu0 0.0
      %454 = vmatpush.msra.mxu0 0.0
      %455 = vmatpush.msra.mxu0 0.0
      %456 = vmatpush.msra.mxu0 0.0
      %457 = vmatpush.msra.mxu0 0.0
      %458 = vmatpush.msra.mxu0 0.0
      %459 = vmatpush.msra.mxu0 0.0
      %460 = vmatpush.msra.mxu0 0.0
      %461 = vmatpush.msra.mxu0 0.0
      %462 = vmatpush.msra.mxu0 %v446
      %463 = vmatpush.msra.mxu0 %v436
      %464 = vmatpush.msra.mxu0 %v434
      %465 = vmatpush.msra.mxu0 %v432
      %466 = vmatpush.msra.mxu0 %v430
      %467 = vmatmul.f32.gmra.mxu0 %v442
      %v468 = vpop.f32.mrf.mxu0
      %v469 = vadd.f32 0.0, %v468
      %470 = vdwg.mxu0
      %471 = vmatpush.msra.mxu0 0.0
      %472 = vmatpush.msra.mxu0 0.0
      %473 = vmatpush.msra.mxu0 0.0
      %474 = vmatpush.msra.mxu0 0.0
      %475 = vmatpush.msra.mxu0 0.0
      %476 = vmatpush.msra.mxu0 0.0
      %477 = vmatpush.msra.mxu0 0.0
      %478 = vmatpush.msra.mxu0 0.0
      %479 = vmatpush.msra.mxu0 0.0
      %480 = vmatpush.msra.mxu0 0.0
      %481 = vmatpush.msra.mxu0 0.0
      %482 = vmatpush.msra.mxu0 %v449
      %483 = vmatpush.msra.mxu0 %v437
      %484 = vmatpush.msra.mxu0 %v435
      %485 = vmatpush.msra.mxu0 %v433
      %486 = vmatpush.msra.mxu0 %v431
      %487 = vmatmul.f32.gmra.mxu0 %v442
      %v488 = vpop.f32.mrf.mxu0
      %v489 = vadd.f32 0.0, %v488
      %490 = vdwg.mxu0
      %v491 = vsel %vm444, %v469, 0.0
      %v492 = vsel %vm444, %v489, 0.0
      %v493 = vadd.f32 %v491, %v492
      %494 = vadd.xlane.f32.xlu0 %v493
      %v495 = vpop.xlane.xlu0 %494
      %v496 = vmul.f32 %v495, 0.00390625
      %v497 = vmul.f32 %v469, %v469
      %v498 = vmul.f32 %v489, %v489
      %v499 = vsel %vm444, %v497, 0.0
      %v500 = vsel %vm444, %v498, 0.0
      %v501 = vadd.f32 %v499, %v500
      %502 = vadd.xlane.f32.xlu0 %v501
      %v503 = vpop.xlane.xlu0 %502
      %v504 = vmul.f32 %v503, 0.00390625
      %v505 = vmul.f32 %v496, %v496
      %v506 = vsub.f32 %v504, %v505
      %v507 = vmax.f32 %v506, 0.0
      %v508 = vsub.f32 %v469, %v496
      %v509 = vsub.f32 %v489, %v496
      %v510 = vadd.f32 %v507, 1e-05
      %v511 = vrsqrt.pop %v510
      %v512 = vmul.f32 %v511, %v510
      %v513 = vmul.f32 %v512, %v511
      %v514 = vmul.f32 0.5, %v513
      %v515 = vsub.f32 1.5, %v514
      %v516 = vmul.f32 %v511, %v515
      %vm517 = vweird.f32 %v510
      %vm518 = vweird.f32 %v511
      %vm519 = vmor %vm517, %vm518
      %v520 = vsel %vm519, %v511, %v516
      %v521 = vmul.f32 %v508, %v520
      %v522 = vmul.f32 %v509, %v520
      %v523 = vmax.f32 %v521, 0.0
      %v524 = vmax.f32 %v522, 0.0
      %vm525 = vcmask 134144
      %526 = vst.msk [vmem:[#allocation3] sm:$0xf] %vm525, 0.0
      %vm527 = vcmask 273544
      %528 = vst.msk [vmem:[#allocation3 + $0x8] sm:$0xf] %vm527, 0.0
      %v531 = vrot.slane %v524, 4
      %v532 = vsel %vm444, %v523, %v531
      %533 = vrot.lane.b32.xlu0 %v532, 17
      %v534 = vpop.permute.xlu0 %533
      %v535 = vrot.slane %v534, 4
      %vm536 = vcmask 138240
      %v537 = vsel %vm536, %v535, %v534
      %vm540 = vcmask 1043592
      %vm541 = vcmask 1047556
      %vm542 = vmor %vm541, %vm540
      %543 = vst.msk [vmem:[#allocation3] sm:$0xff] %vm542, %v537
      %544 = vst.msk [vmem:[#allocation3 + $0x8] sm:$0xf] %vm525, %v535
      %v545 = vld [vmem:[%s2] sm:$0xf]
      %v546 = vld [vmem:[#allocation3] sm:$0xff]
      %548 = vst [vmem:[#allocation1] ss:$2 sm:$0xff] %v546
      %v549 = vld.sshfl [vmem:[#allocation1] sm:$0xff pattern:$0x75316420]
      %v550 = vld.sshfl [vmem:[#allocation1 + $0x8] sm:$0xff pattern:$0x75316420]
      %v553 = vsel %vm206, 0.0, %v549
      %v554 = vsel %vm207, 0.0, %v550
      %555 = vst [vmem:[#allocation2] sm:$0xf] %v553
      %556 = vst [vmem:[#allocation2 + $0x8] sm:$0xf] %v554
      %v557 = vld [vmem:[#allocation3] sm:$0xff]
      %v558 = vld [vmem:[#allocation3 + $0x8] sm:$0xf]
      %s561 = scalar_lea.vmem [#allocation1], 1
      %562 = vst [vmem:[%s561] ss:$2 sm:$0xff] %v557
      %s563 = scalar_lea.vmem [#allocation1], 17
      %564 = vst [vmem:[%s563] ss:$2 sm:$0xff] %v558
      %v565 = vld.sshfl [vmem:[#allocation1] sm:$0xff pattern:$0x75316420]
      %v566 = vld.sshfl [vmem:[#allocation1 + $0x8] sm:$0xff pattern:$0x75316420]
      %v567 = vld.sshfl [vmem:[#allocation1 + $0x10] sm:$0xff pattern:$0x75316420]
      %568 = vrot.lane.b32.xlu0 %v565, 127
      %v569 = vpop.permute.xlu0 %568
      %570 = vrot.lane.b32.xlu0 %v566, 127
      %v571 = vpop.permute.xlu0 %570
      %572 = vrot.lane.b32.xlu0 %v567, 127
      %v573 = vpop.permute.xlu0 %572
      %v574 = vsel %vm235, %v569, %v571
      %v575 = vsel %vm235, %v571, %v573
      %578 = vst [vmem:[#allocation2] sm:$0xf0] %v574
      %579 = vst [vmem:[#allocation2 + $0x8] sm:$0xf0] %v575
      %v580 = vld [vmem:[#allocation3] sm:$0xff]
      %v581 = vld [vmem:[#allocation3 + $0x8] sm:$0xf]
      %584 = vst [vmem:[#allocation1] ss:$2 sm:$0xff] %v580
      %s585 = scalar_lea.vmem [#allocation1], 16
      %586 = vst [vmem:[%s585] ss:$2 sm:$0xff] %v581
      %v587 = vld.sshfl [vmem:[#allocation1] sm:$0xff pattern:$0x75316420]
      %v588 = vld.sshfl [vmem:[#allocation1 + $0x8] sm:$0xff pattern:$0x75316420]
      %v589 = vld.sshfl [vmem:[#allocation1 + $0x10] sm:$0xff pattern:$0x75316420]
      %590 = vrot.lane.b32.xlu0 %v587, 126
      %v591 = vpop.permute.xlu0 %590
      %592 = vrot.lane.b32.xlu0 %v588, 126
      %v593 = vpop.permute.xlu0 %592
      %594 = vrot.lane.b32.xlu0 %v589, 126
      %v595 = vpop.permute.xlu0 %594
      %v596 = vsel %vm262, %v591, %v593
      %v597 = vsel %vm262, %v593, %v595
      %v600 = vsel %vm246, 0.0, %v596
      %v601 = vsel %vm247, 0.0, %v597
      %602 = vst [vmem:[#allocation2 + $0x10] sm:$0xf] %v600
      %603 = vst [vmem:[#allocation2 + $0x18] sm:$0xf] %v601
      %v604 = vld [vmem:[#allocation3] sm:$0xff]
      %v605 = vld [vmem:[#allocation3 + $0x8] sm:$0xf]
      %608 = vst [vmem:[#allocation1] ss:$2 sm:$0xff] %v604
      %s609 = scalar_lea.vmem [#allocation1], 16
      %610 = vst [vmem:[%s609] ss:$2 sm:$0xff] %v605
      %v611 = vld.sshfl [vmem:[#allocation1] sm:$0xff pattern:$0x75316420]
      %v612 = vld.sshfl [vmem:[#allocation1 + $0x8] sm:$0xff pattern:$0x75316420]
      %v613 = vld.sshfl [vmem:[#allocation1 + $0x10] sm:$0xff pattern:$0x75316420]
      %614 = vrot.lane.b32.xlu0 %v611, 112
      %v615 = vpop.permute.xlu0 %614
      %616 = vrot.lane.b32.xlu0 %v612, 112
      %v617 = vpop.permute.xlu0 %616
      %618 = vrot.lane.b32.xlu0 %v613, 112
      %v619 = vpop.permute.xlu0 %618
      %v620 = vsel %vm287, %v615, %v617
      %v621 = vsel %vm287, %v617, %v619
      %v624 = vsel %vm206, 0.0, %v620
      %v625 = vsel %vm207, 0.0, %v621
      %v628 = vrot.slane %v624, 4
      %v629 = vrot.slane %v625, 4
      %632 = vst [vmem:[#allocation2 + $0x10] sm:$0xf0] %v628
      %633 = vst [vmem:[#allocation2 + $0x18] sm:$0xf0] %v629
      %v634 = vld [vmem:[#allocation3] sm:$0xff]
      %v635 = vld [vmem:[#allocation3 + $0x8] sm:$0xf]
      %638 = vst [vmem:[#allocation1] ss:$2 sm:$0xff] %v634
      %s639 = scalar_lea.vmem [#allocation1], 16
      %640 = vst [vmem:[%s639] ss:$2 sm:$0xff] %v635
      %v641 = vld.sshfl [vmem:[#allocation1] sm:$0xff pattern:$0x75316420]
      %v642 = vld.sshfl [vmem:[#allocation1 + $0x8] sm:$0xff pattern:$0x75316420]
      %v643 = vld.sshfl [vmem:[#allocation1 + $0x10] sm:$0xff pattern:$0x75316420]
      %644 = vrot.lane.b32.xlu0 %v641, 111
      %v645 = vpop.permute.xlu0 %644
      %646 = vrot.lane.b32.xlu0 %v642, 111
      %v647 = vpop.permute.xlu0 %646
      %648 = vrot.lane.b32.xlu0 %v643, 111
      %v649 = vpop.permute.xlu0 %648
      %v650 = vsel %vm318, %v645, %v647
      %v651 = vsel %vm318, %v647, %v649
      %654 = vst [vmem:[#allocation2 + $0x20] sm:$0xf] %v650
      %655 = vst [vmem:[#allocation2 + $0x28] sm:$0xf] %v651
      %v656 = vld [vmem:[#allocation3] sm:$0xff]
      %v657 = vld [vmem:[#allocation3 + $0x8] sm:$0xf]
      %660 = vst [vmem:[#allocation1] ss:$2 sm:$0xff] %v656
      %s661 = scalar_lea.vmem [#allocation1], 16
      %662 = vst [vmem:[%s661] ss:$2 sm:$0xff] %v657
      %v663 = vld.sshfl [vmem:[#allocation1] sm:$0xff pattern:$0x75316420]
      %v664 = vld.sshfl [vmem:[#allocation1 + $0x8] sm:$0xff pattern:$0x75316420]
      %v665 = vld.sshfl [vmem:[#allocation1 + $0x10] sm:$0xff pattern:$0x75316420]
      %666 = vrot.lane.b32.xlu0 %v663, 110
      %v667 = vpop.permute.xlu0 %666
      %668 = vrot.lane.b32.xlu0 %v664, 110
      %v669 = vpop.permute.xlu0 %668
      %670 = vrot.lane.b32.xlu0 %v665, 110
      %v671 = vpop.permute.xlu0 %670
      %v672 = vsel %vm341, %v667, %v669
      %v673 = vsel %vm341, %v669, %v671
      %v676 = vsel %vm246, 0.0, %v672
      %v677 = vsel %vm247, 0.0, %v673
      %v680 = vrot.slane %v676, 4
      %v681 = vrot.slane %v677, 4
      %684 = vst [vmem:[#allocation2 + $0x20] sm:$0xf0] %v680
      %685 = vst [vmem:[#allocation2 + $0x28] sm:$0xf0] %v681
      %v686 = vld [vmem:[#allocation3] sm:$0xff]
      %v687 = vld [vmem:[#allocation3 + $0x8] sm:$0xf]
      %690 = vst [vmem:[#allocation1] ss:$2 sm:$0xff] %v686
      %s691 = scalar_lea.vmem [#allocation1], 16
      %692 = vst [vmem:[%s691] ss:$2 sm:$0xff] %v687
      %v693 = vld.sshfl [vmem:[#allocation1] sm:$0xff pattern:$0x75316420]
      %v694 = vld.sshfl [vmem:[#allocation1 + $0x8] sm:$0xff pattern:$0x75316420]
      %v695 = vld.sshfl [vmem:[#allocation1 + $0x10] sm:$0xff pattern:$0x75316420]
      %696 = vrot.lane.b32.xlu0 %v693, 96
      %v697 = vpop.permute.xlu0 %696
      %698 = vrot.lane.b32.xlu0 %v694, 96
      %v699 = vpop.permute.xlu0 %698
      %700 = vrot.lane.b32.xlu0 %v695, 96
      %v701 = vpop.permute.xlu0 %700
      %v702 = vsel %vm372, %v697, %v699
      %v703 = vsel %vm372, %v699, %v701
      %v706 = vsel %vm206, 0.0, %v702
      %v707 = vsel %vm207, 0.0, %v703
      %708 = vst [vmem:[#allocation2 + $0x30] sm:$0xf] %v706
      %709 = vst [vmem:[#allocation2 + $0x38] sm:$0xf] %v707
      %v710 = vld [vmem:[#allocation3] sm:$0xff]
      %v711 = vld [vmem:[#allocation3 + $0x8] sm:$0xf]
      %s714 = scalar_lea.vmem [#allocation1], 1
      %715 = vst [vmem:[%s714] ss:$2 sm:$0xff] %v710
      %s716 = scalar_lea.vmem [#allocation1], 17
      %717 = vst [vmem:[%s716] ss:$2 sm:$0xff] %v711
      %v718 = vld.sshfl [vmem:[#allocation1] sm:$0xff pattern:$0x75316420]
      %v719 = vld.sshfl [vmem:[#allocation1 + $0x8] sm:$0xff pattern:$0x75316420]
      %v720 = vld.sshfl [vmem:[#allocation1 + $0x10] sm:$0xff pattern:$0x75316420]
      %721 = vrot.lane.b32.xlu0 %v718, 95
      %v722 = vpop.permute.xlu0 %721
      %723 = vrot.lane.b32.xlu0 %v719, 95
      %v724 = vpop.permute.xlu0 %723
      %725 = vrot.lane.b32.xlu0 %v720, 95
      %v726 = vpop.permute.xlu0 %725
      %v727 = vsel %vm398, %v722, %v724
      %v728 = vsel %vm398, %v724, %v726
      %731 = vst [vmem:[#allocation2 + $0x30] sm:$0xf0] %v727
      %732 = vst [vmem:[#allocation2 + $0x38] sm:$0xf0] %v728
      %v733 = vld [vmem:[#allocation3] sm:$0xff]
      %v734 = vld [vmem:[#allocation3 + $0x8] sm:$0xf]
      %737 = vst [vmem:[#allocation1] ss:$2 sm:$0xff] %v733
      %s738 = scalar_lea.vmem [#allocation1], 16
      %739 = vst [vmem:[%s738] ss:$2 sm:$0xff] %v734
      %v740 = vld.sshfl [vmem:[#allocation1] sm:$0xff pattern:$0x75316420]
      %v741 = vld.sshfl [vmem:[#allocation1 + $0x8] sm:$0xff pattern:$0x75316420]
      %v742 = vld.sshfl [vmem:[#allocation1 + $0x10] sm:$0xff pattern:$0x75316420]
      %743 = vrot.lane.b32.xlu0 %v740, 94
      %v744 = vpop.permute.xlu0 %743
      %745 = vrot.lane.b32.xlu0 %v741, 94
      %v746 = vpop.permute.xlu0 %745
      %747 = vrot.lane.b32.xlu0 %v742, 94
      %v748 = vpop.permute.xlu0 %747
      %v749 = vsel %vm421, %v744, %v746
      %v750 = vsel %vm421, %v746, %v748
      %v753 = vsel %vm246, 0.0, %v749
      %v754 = vsel %vm247, 0.0, %v750
      %755 = vst [vmem:[#allocation2 + $0x40] sm:$0xf] %v753
      %756 = vst [vmem:[#allocation2 + $0x48] sm:$0xf] %v754
      %v757 = vld [vmem:[#allocation2] sm:$0xff]
      %v758 = vld [vmem:[#allocation2 + $0x8] sm:$0xff]
      %v759 = vld [vmem:[#allocation2 + $0x10] sm:$0xff]
      %v760 = vld [vmem:[#allocation2 + $0x18] sm:$0xff]
      %v761 = vld [vmem:[#allocation2 + $0x20] sm:$0xff]
      %v762 = vld [vmem:[#allocation2 + $0x28] sm:$0xff]
      %v763 = vld [vmem:[#allocation2 + $0x30] sm:$0xff]
      %v764 = vld [vmem:[#allocation2 + $0x38] sm:$0xff]
      %v765 = vld [vmem:[#allocation2 + $0x40] sm:$0xf]
      %v766 = vld [vmem:[#allocation2 + $0x48] sm:$0xf]
      %v768 = vsel %vm440, %v545, 0
      %v771 = vsel %vm444, %v765, 0
      %v774 = vsel %vm444, %v766, 0
      %776 = vmatpush.msra.mxu0 0.0
      %777 = vmatpush.msra.mxu0 0.0
      %778 = vmatpush.msra.mxu0 0.0
      %779 = vmatpush.msra.mxu0 0.0
      %780 = vmatpush.msra.mxu0 0.0
      %781 = vmatpush.msra.mxu0 0.0
      %782 = vmatpush.msra.mxu0 0.0
      %783 = vmatpush.msra.mxu0 0.0
      %784 = vmatpush.msra.mxu0 0.0
      %785 = vmatpush.msra.mxu0 0.0
      %786 = vmatpush.msra.mxu0 0.0
      %787 = vmatpush.msra.mxu0 %v771
      %788 = vmatpush.msra.mxu0 %v763
      %789 = vmatpush.msra.mxu0 %v761
      %790 = vmatpush.msra.mxu0 %v759
      %791 = vmatpush.msra.mxu0 %v757
      %792 = vmatmul.f32.gmra.mxu0 %v768
      %v793 = vpop.f32.mrf.mxu0
      %v794 = vadd.f32 0.0, %v793
      %795 = vdwg.mxu0
      %796 = vmatpush.msra.mxu0 0.0
      %797 = vmatpush.msra.mxu0 0.0
      %798 = vmatpush.msra.mxu0 0.0
      %799 = vmatpush.msra.mxu0 0.0
      %800 = vmatpush.msra.mxu0 0.0
      %801 = vmatpush.msra.mxu0 0.0
      %802 = vmatpush.msra.mxu0 0.0
      %803 = vmatpush.msra.mxu0 0.0
      %804 = vmatpush.msra.mxu0 0.0
      %805 = vmatpush.msra.mxu0 0.0
      %806 = vmatpush.msra.mxu0 0.0
      %807 = vmatpush.msra.mxu0 %v774
      %808 = vmatpush.msra.mxu0 %v764
      %809 = vmatpush.msra.mxu0 %v762
      %810 = vmatpush.msra.mxu0 %v760
      %811 = vmatpush.msra.mxu0 %v758
      %812 = vmatmul.f32.gmra.mxu0 %v768
      %v813 = vpop.f32.mrf.mxu0
      %v814 = vadd.f32 0.0, %v813
      %815 = vdwg.mxu0
      %v816 = vsel %vm444, %v794, 0.0
      %v817 = vsel %vm444, %v814, 0.0
      %v818 = vadd.f32 %v816, %v817
      %819 = vadd.xlane.f32.xlu0 %v818
      %v820 = vpop.xlane.xlu0 %819
      %v821 = vmul.f32 %v820, 0.00390625
      %v822 = vmul.f32 %v794, %v794
      %v823 = vmul.f32 %v814, %v814
      %v824 = vsel %vm444, %v822, 0.0
      %v825 = vsel %vm444, %v823, 0.0
      %v826 = vadd.f32 %v824, %v825
      %827 = vadd.xlane.f32.xlu0 %v826
      %v828 = vpop.xlane.xlu0 %827
      %v829 = vmul.f32 %v828, 0.00390625
      %v830 = vmul.f32 %v821, %v821
      %v831 = vsub.f32 %v829, %v830
      %v832 = vmax.f32 %v831, 0.0
      %v833 = vsub.f32 %v794, %v821
      %v834 = vsub.f32 %v814, %v821
      %v835 = vadd.f32 %v832, 1e-05
      %v836 = vrsqrt.pop %v835
      %v837 = vmul.f32 %v836, %v835
      %v838 = vmul.f32 %v837, %v836
      %v839 = vmul.f32 0.5, %v838
      %v840 = vsub.f32 1.5, %v839
      %v841 = vmul.f32 %v836, %v840
      %vm842 = vweird.f32 %v835
      %vm843 = vweird.f32 %v836
      %vm844 = vmor %vm842, %vm843
      %v845 = vsel %vm844, %v836, %v841
      %v846 = vmul.f32 %v833, %v845
      %v847 = vmul.f32 %v834, %v845
      %v848 = vld [vmem:[%s165] sm:$0xff]
      %v849 = vld [vmem:[%s165 + $0x8] sm:$0xf]
      %v852 = vrot.slane %v847, 4
      %v853 = vsel %vm444, %v846, %v852
      %854 = vrot.lane.b32.xlu0 %v853, 17
      %v855 = vpop.permute.xlu0 %854
      %v856 = vrot.slane %v855, 4
      %v857 = vsel %vm536, %v856, %v855
      %v860 = vadd.f32 %v848, %v857
      %v861 = vadd.f32 %v849, %v856
      %864 = vrot.lane.b32.xlu0 %v860, 111
      %v865 = vpop.permute.xlu0 %864
      %866 = vrot.lane.b32.xlu0 %v861, 111
      %v867 = vpop.permute.xlu0 %866
      %v868 = vrot.slane %v865, 4
      %v869 = vrot.slane %v867, 4
      %v870 = vsel %vm444, %v868, %v869
      %v871 = vsel %vm318, %v865, %v870
      %873 = vst [vmem:[%s170] sm:$0xff] %v871
      %p874 = scmp.lt.s32.totalorder %s14, 1
      %s875 = scalar_select %p874, %s14, 1
      %s876 = smul.addr %s875, 2
      %s877 = smul.addr %s876, 4
      %s878 = scalar_lea.vmem %s3, %s877
      // Predicated region
      $region33: #{residual_block.1} parent=31 // pred_check
        %p879 = pneg %p100
      $region34: #{residual_block.1} parent=31 // pred_check_branch
        %881 = sbr.rel (%p879) target = $region36
      $region35: #{residual_block.1} parent=31 // pred_region
        _
      $region36: #{residual_block.1} parent=31 // pred_fallthru
        _
    $region32: #{residual_block.1} parent=5 // pred_fallthru
      _
    %p882 = scmp.le.s32.totalorder 2, %s9
    // Predicated region
    $region37: #{residual_block.1} parent=5 // pred_check
      %p883 = pneg %p882
    $region38: #{residual_block.1} parent=5 // pred_check_branch
      %885 = sbr.rel (%p883) target = $region40
    $region39: #{residual_block.1} parent=5 // pred_region
      %s886 = ssub.s32 %s9, 2
      // Predicated region
      $region41: #{residual_block.1} parent=39 // pred_check
        %p887 = pneg %p106
      $region42: #{residual_block.1} parent=39 // pred_check_branch
        %889 = sbr.rel (%p887) target = $region44
      $region43: #{residual_block.1} parent=39 // pred_region
        %p890 = scmp.lt.s32.totalorder %s15, 1
        %s891 = scalar_select %p890, %s15, 1
        %s892 = smul.addr %s891, 2
        %s893 = smul.addr %s892, 4
        %s894 = scalar_lea.vmem %s3, %s893
      $region44: #{residual_block.1} parent=39 // pred_fallthru
        _
    $region40: #{residual_block.1} parent=5 // pred_fallthru
      _
  $region6: #{residual_block.1} parent=0 // loop_footer
    %s13 = sadd.s32 1, %s9
  $region7: #{residual_block.1} parent=0 // loop_footer_branch
    %8 = sbr.rel target = $region3
  $region8: #{residual_block.1} parent=0 // loop_exit
    _

</llo_original>
